<compile_context>
chip_gen: v6e
topology: v6e:2x2x1
jax: 0.10.0
libtpu: 0.0.40
codegen_flags: <defaults>
</compile_context>

<pallas_src>
import functools

import jax
import jax.numpy as jnp
from jax.experimental import pallas as pl
from jax.experimental.pallas import tpu as pltpu


def _triplet_adp_rows_kernel(x_blk_ref, xt_full_ref, sq_blk_ref, sq_full_ref,
                             tgt_col_ref, tgt_row_ref, fp_ref, cn_ref, *,
                             alpha):
    xb = x_blk_ref[...]                       # (TM, D) matmul dtype
    xt = xt_full_ref[...]                     # (D,  N) matmul dtype (resident)

    # Canonical (TM, D) x (D, N) MXU contraction with f32 accumulation.
    gram = jax.lax.dot_general(
        xb, xt,
        dimension_numbers=(((1,), (0,)), ((), ())),
        preferred_element_type=jnp.float32)   # (TM, N) f32

    sq_b = sq_blk_ref[...]                    # (TM, 1) f32 (precomputed)
    sq_r = sq_full_ref[...]                   # (1,  N) f32 (precomputed)

    # Pairwise euclidean distances, clamped + sqrt (matches pdist_torch).
    dist = jnp.sqrt(jnp.maximum(sq_b + sq_r - 2.0 * gram, 1e-12))   # (TM, N)

    is_pos = (tgt_col_ref[...] == tgt_row_ref[...]).astype(jnp.float32)
    is_neg = 1.0 - is_pos

    # --- positive side: softmax over alpha*d_ap (masked) ---------------------
    d_ap = dist * is_pos
    s_p = d_ap if alpha == 1.0 else d_ap * alpha
    e_p = jnp.exp(s_p - jnp.max(s_p, axis=1, keepdims=True)) * is_pos
    z_p = jnp.sum(e_p, axis=1, keepdims=True) + 1e-6
    fp_ref[...] = jnp.sum(d_ap * e_p, axis=1, keepdims=True) / z_p

    # --- negative side --------------------------------------------------------
    # The masked row max is exactly 0 (positives contribute 0, negatives <= 0),
    # so no max/subtract is needed; -alpha*dist <= 0 keeps exp in (0, 1], so
    # masking only after the exp is exact (masked entries become exactly 0).
    s_n = -dist if alpha == 1.0 else dist * (-alpha)
    e_n = jnp.exp(s_n) * is_neg
    z_n = jnp.sum(e_n, axis=1, keepdims=True) + 1e-6
    cn_ref[...] = jnp.sum(dist * e_n, axis=1, keepdims=True) / z_n


def _round_up(x, m):
    return (x + m - 1) // m * m


def _vmem_capacity_bytes():
    """Physical per-core VMEM, or None if it cannot be queried."""
    try:
        cap = getattr(pltpu.get_tpu_info(), "vmem_capacity_bytes", None)
        return int(cap) if cap else None
    except Exception:
        return None


def _vmem_policy():
    """(tile-pick budget, scoped-VMEM limit, max row tile) for this part."""
    cap = _vmem_capacity_bytes()
    if cap is None:                       # unknown part: previous proven-safe caps
        return 20 << 20, 32 << 20, 256
    if cap >= (128 << 20):                # v5e / v6e / v5p: 128 MiB physical
        return 64 << 20, 96 << 20, 512
    return 28 << 20, 48 << 20, 256        # v7x-class: 64 MiB physical


def _pick_tile(n, d, itemsize, budget, tm_max):
    """Largest row tile TM (multiple of 8, <= tm_max) whose working set fits the
    budget, capped so the row grid has >= 2 steps (v7x megacore) when n allows."""
    tm = tm_max
    while tm > 8:
        est = (10 * tm * n * 4            # live (TM, N) f32 temporaries
               + 2 * tm * d * itemsize    # double-buffered query row tiles
               + n * d * itemsize         # resident x^T (single-buffered)
               + 8 * (n + tm) * 4)        # norm / label vectors
        if est <= budget:
            break
        tm //= 2
    tm = min(tm, _round_up(n, 8))
    if n > 8:                             # allow >= 2 grid steps for 2-TC parts
        tm = min(tm, _round_up(-(-n // 2), 8))
    return max(tm, 8)


def triplet_loss_adp(inputs, targets, *, alpha=1.0, gamma=1.0, square=0,
                     normalize_feature=False, matmul_dtype=None):
    """inputs: (N, D) features, targets: (N,) integer labels.
    Returns (loss: f32 scalar, correct: i32 scalar)."""
    n, d = inputs.shape
    x = inputs
    if normalize_feature:
        xf = x.astype(jnp.float32)
        x = xf / (jnp.sqrt(jnp.sum(xf * xf, axis=-1, keepdims=True)) + 1e-12)

    xf32 = x.astype(jnp.float32)
    sq = jnp.sum(xf32 * xf32, axis=1)                  # (N,) exact f32 ||x||^2
    sq_row = sq.reshape(1, n)

    x_mm = x if matmul_dtype is None else x.astype(matmul_dtype)
    x_t = x_mm.T                                       # (D, N), one-time XLA op
    itemsize = jnp.dtype(x_mm.dtype).itemsize

    budget, vmem_limit, tm_max = _vmem_policy()
    tm = _pick_tile(n, d, itemsize, budget, tm_max)
    n_pad = _round_up(n, tm)
    pad = n_pad - n

    tgt_f = targets.astype(jnp.float32)                # exact for |label| < 2^24
    tgt_row = tgt_f.reshape(1, n)
    # Only the query (row) side is padded; padded rows produce harmless values
    # that are sliced off below. Columns always span the true N.
    x_rows = jnp.pad(x_mm, ((0, pad), (0, 0))) if pad else x_mm
    sq_col = (jnp.pad(sq, (0, pad)) if pad else sq).reshape(n_pad, 1)
    tgt_col = (jnp.pad(tgt_f, (0, pad)) if pad else tgt_f).reshape(n_pad, 1)

    kernel = functools.partial(_triplet_adp_rows_kernel, alpha=float(alpha))

    def run(single_buffer_invariants):
        def const_spec(shape):
            # Grid-invariant operands: single-buffer them (no point double
            # buffering data whose block index never changes).
            if single_buffer_invariants:
                return pl.BlockSpec(shape, lambda i: (0, 0),
                                    pipeline_mode=pl.Buffered(1))
            return pl.BlockSpec(shape, lambda i: (0, 0))

        return pl.pallas_call(
            kernel,
            out_shape=(
                jax.ShapeDtypeStruct((n_pad, 1), jnp.float32),
                jax.ShapeDtypeStruct((n_pad, 1), jnp.float32),
            ),
            grid=(n_pad // tm,),
            in_specs=[
                pl.BlockSpec((tm, d), lambda i: (i, 0)),   # query row tile
                const_spec((d, n)),                        # resident x^T
                pl.BlockSpec((tm, 1), lambda i: (i, 0)),   # per-row ||x||^2
                const_spec((1, n)),                        # per-column ||x||^2
                pl.BlockSpec((tm, 1), lambda i: (i, 0)),   # row labels (column)
                const_spec((1, n)),                        # all labels (row)
            ],
            out_specs=(
                # Outputs stay (tm, 1): lane-dense (1, tm) blocks would need an
                # in-kernel sublane->lane relayout for a tiny per-step writeback.
                pl.BlockSpec((tm, 1), lambda i: (i, 0)),
                pl.BlockSpec((tm, 1), lambda i: (i, 0)),
            ),
            compiler_params=pltpu.CompilerParams(
                dimension_semantics=("parallel",),
                vmem_limit_bytes=vmem_limit),
        )(x_rows, x_t, sq_col, sq_row, tgt_col, tgt_row)

    try:
        fp, cn = run(True)
    except Exception:
        # Fallback for jax versions without single-buffer pipeline_mode support.
        fp, cn = run(False)

    furthest_positive = fp[:n, 0]
    closest_negative = cn[:n, 0]

    # O(N) SoftMarginLoss tail in plain JAX (numerically stable softplus).
    if square == 0:
        z = gamma * (closest_negative - furthest_positive)
        loss = jnp.mean(jax.nn.softplus(-z))                   # target y = +1
    else:
        diff_pow = jnp.minimum(
            jnp.square(furthest_positive - closest_negative) * gamma, 10.0)
        y = jnp.where(furthest_positive > closest_negative, -1.0, 1.0)
        loss = jnp.mean(jax.nn.softplus(-y * diff_pow))

    correct = jnp.sum((closest_negative >= furthest_positive).astype(jnp.int32))
    return loss, correct


def _reference(x, targets, alpha, gamma, square, normalize_feature):
    """Plain-JAX mirror of the PyTorch TripletLoss_ADP forward."""
    x = x.astype(jnp.float32)
    if normalize_feature:
        x = x / (jnp.sqrt(jnp.sum(x * x, axis=-1, keepdims=True)) + 1e-12)
    sq = jnp.sum(x * x, axis=1, keepdims=True)
    dist = jnp.sqrt(jnp.maximum(sq + sq.T - 2.0 * (x @ x.T), 1e-12))
    t = targets
    is_pos = (t[:, None] == t[None, :]).astype(jnp.float32)
    is_neg = 1.0 - is_pos
    d_ap, d_an = dist * is_pos, dist * is_neg

    def sw(d, m):
        mx = jnp.max(d * m, axis=1, keepdims=True)
        e = jnp.exp(d - mx) * m
        return e / (jnp.sum(e, axis=1, keepdims=True) + 1e-6)

    fp = jnp.sum(d_ap * sw(d_ap * alpha, is_pos), axis=1)
    cn = jnp.sum(d_an * sw(-d_an * alpha, is_neg), axis=1)
    if square == 0:
        loss = jnp.mean(jax.nn.softplus(-gamma * (cn - fp)))
    else:
        diff_pow = jnp.minimum(jnp.square(fp - cn) * gamma, 10.0)
        y = jnp.where(fp > cn, -1.0, 1.0)
        loss = jnp.mean(jax.nn.softplus(-y * diff_pow))
    correct = jnp.sum((cn >= fp).astype(jnp.int32))
    return loss, correct


if __name__ == "__main__":
    key = jax.random.PRNGKey(0)
    k1, k2 = jax.random.split(key)

    # Case 1: 4 identities x 2 samples, 32-d features, square=0 (default path).
    N, D = 8, 32
    x = jax.random.normal(k1, (N, D), dtype=jnp.float32)
    targets = jnp.array([0, 0, 1, 1, 2, 2, 3, 3], dtype=jnp.int32)

    loss, correct = triplet_loss_adp(x, targets, alpha=1.0, gamma=1.0, square=0)
    jax.block_until_ready((loss, correct))
    loss_ref, correct_ref = _reference(x, targets, 1.0, 1.0, 0, False)
    assert jnp.allclose(loss, loss_ref, rtol=1e-5, atol=1e-5), (loss, loss_ref)
    assert int(correct) == int(correct_ref), (correct, correct_ref)

    # Case 2: non-multiple-of-8 batch (row padding + 2-step grid), square=1,
    # normalized features.
    N2, D2 = 20, 32
    x2 = jax.random.normal(k2, (N2, D2), dtype=jnp.float32)
    targets2 = jnp.arange(N2, dtype=jnp.int32) // 4        # 5 identities x 4
    loss2, correct2 = triplet_loss_adp(x2, targets2, alpha=1.0, gamma=1.0,
                                       square=1, normalize_feature=True)
    jax.block_until_ready((loss2, correct2))
    loss2_ref, correct2_ref = _reference(x2, targets2, 1.0, 1.0, 1, True)
    assert jnp.allclose(loss2, loss2_ref, rtol=1e-5, atol=1e-5), (loss2, loss2_ref)
    assert int(correct2) == int(correct2_ref), (correct2, correct2_ref)

    # Case 3: bf16 Gram operands (optional fast MXU path) — smoke test only;
    # norms stay f32, only the cross term is bf16-precision.
    loss3, correct3 = triplet_loss_adp(x2, targets2, alpha=1.0, gamma=1.0,
                                       square=0, matmul_dtype=jnp.bfloat16)
    jax.block_until_ready((loss3, correct3))
    assert bool(jnp.isfinite(loss3)), loss3

    print("KERNEL_OK")
</pallas_src>

<mosaic_0001>
module attributes {stable_mosaic.version = 11 : i64} {
  func.func @_triplet_adp_rows_kernel(%arg0: i32, %arg1: memref<8x32xf32, #tpu.memory_space<vmem>>, %arg2: memref<32x8xf32, #tpu.memory_space<vmem>>, %arg3: memref<8x1xf32, #tpu.memory_space<vmem>>, %arg4: memref<1x8xf32, #tpu.memory_space<vmem>>, %arg5: memref<8x1xf32, #tpu.memory_space<vmem>>, %arg6: memref<1x8xf32, #tpu.memory_space<vmem>>, %arg7: memref<8x1xf32, #tpu.memory_space<vmem>>, %arg8: memref<8x1xf32, #tpu.memory_space<vmem>>) attributes {dimension_semantics = [#tpu.dimension_semantics<parallel>], iteration_bounds = array<i64: 1>, scalar_prefetch = 0 : i64, scratch_operands = 0 : i64, tpu.core_type = #tpu.core_type<tc>, window_params = [{transform_indices = @transform_0, window_bounds = array<i64: 8, 32>}, {pipeline_mode = #tpu.pipeline_mode<synchronous>, transform_indices = @transform_1, window_bounds = array<i64: 32, 8>}, {transform_indices = @transform_2, window_bounds = array<i64: 8, 1>}, {pipeline_mode = #tpu.pipeline_mode<synchronous>, transform_indices = @transform_3, window_bounds = array<i64: 1, 8>}, {transform_indices = @transform_4, window_bounds = array<i64: 8, 1>}, {pipeline_mode = #tpu.pipeline_mode<synchronous>, transform_indices = @transform_5, window_bounds = array<i64: 1, 8>}, {transform_indices = @transform_6, window_bounds = array<i64: 8, 1>}, {transform_indices = @transform_7, window_bounds = array<i64: 8, 1>}]} {
    %c0 = arith.constant 0 : index
    %c0_0 = arith.constant 0 : index
    %0 = vector.load %arg1[%c0, %c0_0] : memref<8x32xf32, #tpu.memory_space<vmem>>, vector<8x32xf32>
    %c0_1 = arith.constant 0 : index
    %c0_2 = arith.constant 0 : index
    %1 = vector.load %arg2[%c0_1, %c0_2] : memref<32x8xf32, #tpu.memory_space<vmem>>, vector<32x8xf32>
    %cst = arith.constant dense<0.000000e+00> : vector<8x8xf32>
    %2 = tpu.matmul %0, %1, %cst {dimension_numbers = #tpu.dot_dimension_numbers<[1], [0], [0], [1], [0, 0, 1, 1], [], []>} : vector<8x32xf32>, vector<32x8xf32>, vector<8x8xf32> -> vector<8x8xf32>
    %c0_3 = arith.constant 0 : index
    %c0_4 = arith.constant 0 : index
    %3 = vector.load %arg3[%c0_3, %c0_4] : memref<8x1xf32, #tpu.memory_space<vmem>>, vector<8x1xf32>
    %c0_5 = arith.constant 0 : index
    %c0_6 = arith.constant 0 : index
    %4 = vector.load %arg4[%c0_5, %c0_6] : memref<1x8xf32, #tpu.memory_space<vmem>>, vector<1x8xf32>
    %5 = vector.broadcast %3 : vector<8x1xf32> to vector<8x8xf32>
    %6 = vector.broadcast %4 : vector<1x8xf32> to vector<8x8xf32>
    %7 = arith.addf %5, %6 : vector<8x8xf32>
    %cst_7 = arith.constant 2.000000e+00 : f32
    %8 = vector.broadcast %cst_7 : f32 to vector<8x8xf32>
    %9 = arith.mulf %8, %2 : vector<8x8xf32>
    %10 = arith.subf %7, %9 : vector<8x8xf32>
    %cst_8 = arith.constant 9.99999996E-13 : f32
    %11 = vector.broadcast %cst_8 : f32 to vector<8x8xf32>
    %12 = arith.maximumf %10, %11 : vector<8x8xf32>
    %13 = math.sqrt %12 : vector<8x8xf32>
    %c0_9 = arith.constant 0 : index
    %c0_10 = arith.constant 0 : index
    %14 = vector.load %arg5[%c0_9, %c0_10] : memref<8x1xf32, #tpu.memory_space<vmem>>, vector<8x1xf32>
    %c0_11 = arith.constant 0 : index
    %c0_12 = arith.constant 0 : index
    %15 = vector.load %arg6[%c0_11, %c0_12] : memref<1x8xf32, #tpu.memory_space<vmem>>, vector<1x8xf32>
    %16 = vector.broadcast %14 : vector<8x1xf32> to vector<8x8xf32>
    %17 = vector.broadcast %15 : vector<1x8xf32> to vector<8x8xf32>
    %18 = arith.cmpf oeq, %16, %17 : vector<8x8xf32>
    %19 = arith.extui %18 : vector<8x8xi1> to vector<8x8xi32>
    %20 = arith.sitofp %19 : vector<8x8xi32> to vector<8x8xf32>
    %cst_13 = arith.constant 1.000000e+00 : f32
    %21 = vector.broadcast %cst_13 : f32 to vector<8x8xf32>
    %22 = arith.subf %21, %20 : vector<8x8xf32>
    %23 = arith.mulf %13, %20 : vector<8x8xf32>
    %cst_14 = arith.constant dense<0xFF800000> : vector<8xf32>
    %24 = vector.multi_reduction <maximumf>, %23, %cst_14 [1] : vector<8x8xf32> to vector<8xf32>
    %25 = vector.shape_cast %24 : vector<8xf32> to vector<8x1xf32>
    %26 = vector.broadcast %25 : vector<8x1xf32> to vector<8x8xf32>
    %27 = arith.subf %23, %26 : vector<8x8xf32>
    %28 = math.exp %27 : vector<8x8xf32>
    %29 = arith.mulf %28, %20 : vector<8x8xf32>
    %cst_15 = arith.constant dense<0.000000e+00> : vector<8xf32>
    %30 = vector.multi_reduction <add>, %29, %cst_15 [1] : vector<8x8xf32> to vector<8xf32>
    %31 = vector.shape_cast %30 : vector<8xf32> to vector<8x1xf32>
    %cst_16 = arith.constant 9.99999997E-7 : f32
    %32 = vector.broadcast %cst_16 : f32 to vector<8x1xf32>
    %33 = arith.addf %31, %32 : vector<8x1xf32>
    %34 = arith.mulf %23, %29 : vector<8x8xf32>
    %cst_17 = arith.constant dense<0.000000e+00> : vector<8xf32>
    %35 = vector.multi_reduction <add>, %34, %cst_17 [1] : vector<8x8xf32> to vector<8xf32>
    %36 = vector.shape_cast %35 : vector<8xf32> to vector<8x1xf32>
    %37 = arith.divf %36, %33 : vector<8x1xf32>
    %c0_18 = arith.constant 0 : index
    %c0_19 = arith.constant 0 : index
    %38 = vector.load %arg7[%c0_18, %c0_19] : memref<8x1xf32, #tpu.memory_space<vmem>>, vector<8x1xf32>
    tpu.vector_store %arg7[%c0_18, %c0_19], %37 {strides = array<i32>} : memref<8x1xf32, #tpu.memory_space<vmem>>, vector<8x1xf32>,
    %cst_20 = arith.constant 0.000000e+00 : f32
    %39 = vector.broadcast %cst_20 : f32 to vector<8x8xf32>
    %40 = arith.subf %39, %13 : vector<8x8xf32>
    %41 = math.exp %40 : vector<8x8xf32>
    %42 = arith.mulf %41, %22 : vector<8x8xf32>
    %cst_21 = arith.constant dense<0.000000e+00> : vector<8xf32>
    %43 = vector.multi_reduction <add>, %42, %cst_21 [1] : vector<8x8xf32> to vector<8xf32>
    %44 = vector.shape_cast %43 : vector<8xf32> to vector<8x1xf32>
    %cst_22 = arith.constant 9.99999997E-7 : f32
    %45 = vector.broadcast %cst_22 : f32 to vector<8x1xf32>
    %46 = arith.addf %44, %45 : vector<8x1xf32>
    %47 = arith.mulf %13, %42 : vector<8x8xf32>
    %cst_23 = arith.constant dense<0.000000e+00> : vector<8xf32>
    %48 = vector.multi_reduction <add>, %47, %cst_23 [1] : vector<8x8xf32> to vector<8xf32>
    %49 = vector.shape_cast %48 : vector<8xf32> to vector<8x1xf32>
    %50 = arith.divf %49, %46 : vector<8x1xf32>
    %c0_24 = arith.constant 0 : index
    %c0_25 = arith.constant 0 : index
    %51 = vector.load %arg8[%c0_24, %c0_25] : memref<8x1xf32, #tpu.memory_space<vmem>>, vector<8x1xf32>
    tpu.vector_store %arg8[%c0_24, %c0_25], %50 {strides = array<i32>} : memref<8x1xf32, #tpu.memory_space<vmem>>, vector<8x1xf32>,
    return
  }
  func.func @transform_0(%arg0: i32) -> (i32, i32) {
    %c0_i32 = arith.constant 0 : i32
    %c0_i32_0 = arith.constant 0 : i32
    return %arg0, %c0_i32 : i32, i32
  }
  func.func @transform_1(%arg0: i32) -> (i32, i32) {
    %c0_i32 = arith.constant 0 : i32
    %c0_i32_0 = arith.constant 0 : i32
    %c0_i32_1 = arith.constant 0 : i32
    return %c0_i32, %c0_i32_0 : i32, i32
  }
  func.func @transform_2(%arg0: i32) -> (i32, i32) {
    %c0_i32 = arith.constant 0 : i32
    %c0_i32_0 = arith.constant 0 : i32
    return %arg0, %c0_i32 : i32, i32
  }
  func.func @transform_3(%arg0: i32) -> (i32, i32) {
    %c0_i32 = arith.constant 0 : i32
    %c0_i32_0 = arith.constant 0 : i32
    %c0_i32_1 = arith.constant 0 : i32
    return %c0_i32, %c0_i32_0 : i32, i32
  }
  func.func @transform_4(%arg0: i32) -> (i32, i32) {
    %c0_i32 = arith.constant 0 : i32
    %c0_i32_0 = arith.constant 0 : i32
    return %arg0, %c0_i32 : i32, i32
  }
  func.func @transform_5(%arg0: i32) -> (i32, i32) {
    %c0_i32 = arith.constant 0 : i32
    %c0_i32_0 = arith.constant 0 : i32
    %c0_i32_1 = arith.constant 0 : i32
    return %c0_i32, %c0_i32_0 : i32, i32
  }
  func.func @transform_6(%arg0: i32) -> (i32, i32) {
    %c0_i32 = arith.constant 0 : i32
    %c0_i32_0 = arith.constant 0 : i32
    return %arg0, %c0_i32 : i32, i32
  }
  func.func @transform_7(%arg0: i32) -> (i32, i32) {
    %c0_i32 = arith.constant 0 : i32
    %c0_i32_0 = arith.constant 0 : i32
    return %arg0, %c0_i32 : i32, i32
  }
}

module attributes {stable_mosaic.version = 11 : i64} {
  func.func @_triplet_adp_rows_kernel(%arg0: i32, %arg1: memref<8x32xf32, #tpu.memory_space<vmem>>, %arg2: memref<32x8xf32, #tpu.memory_space<vmem>>, %arg3: memref<8x1xf32, #tpu.memory_space<vmem>>, %arg4: memref<1x8xf32, #tpu.memory_space<vmem>>, %arg5: memref<8x1xf32, #tpu.memory_space<vmem>>, %arg6: memref<1x8xf32, #tpu.memory_space<vmem>>, %arg7: memref<8x1xf32, #tpu.memory_space<vmem>>, %arg8: memref<8x1xf32, #tpu.memory_space<vmem>>) attributes {dimension_semantics = [#tpu.dimension_semantics<parallel>], iteration_bounds = array<i64: 1>, scalar_prefetch = 0 : i64, scratch_operands = 0 : i64, tpu.core_type = #tpu.core_type<tc>, window_params = [{transform_indices = @transform_0, window_bounds = array<i64: 8, 32>}, {pipeline_mode = #tpu.pipeline_mode<synchronous>, transform_indices = @transform_1, window_bounds = array<i64: 32, 8>}, {transform_indices = @transform_2, window_bounds = array<i64: 8, 1>}, {pipeline_mode = #tpu.pipeline_mode<synchronous>, transform_indices = @transform_3, window_bounds = array<i64: 1, 8>}, {transform_indices = @transform_4, window_bounds = array<i64: 8, 1>}, {pipeline_mode = #tpu.pipeline_mode<synchronous>, transform_indices = @transform_5, window_bounds = array<i64: 1, 8>}, {transform_indices = @transform_6, window_bounds = array<i64: 8, 1>}, {transform_indices = @transform_7, window_bounds = array<i64: 8, 1>}]} {
    %c0 = arith.constant 0 : index
    %c0_0 = arith.constant 0 : index
    %0 = vector.load %arg1[%c0, %c0_0] : memref<8x32xf32, #tpu.memory_space<vmem>>, vector<8x32xf32>
    %c0_1 = arith.constant 0 : index
    %c0_2 = arith.constant 0 : index
    %1 = vector.load %arg2[%c0_1, %c0_2] : memref<32x8xf32, #tpu.memory_space<vmem>>, vector<32x8xf32>
    %cst = arith.constant dense<0.000000e+00> : vector<8x8xf32>
    %2 = tpu.matmul %0, %1, %cst {dimension_numbers = #tpu.dot_dimension_numbers<[1], [0], [0], [1], [0, 0, 1, 1], [], []>} : vector<8x32xf32>, vector<32x8xf32>, vector<8x8xf32> -> vector<8x8xf32>
    %c0_3 = arith.constant 0 : index
    %c0_4 = arith.constant 0 : index
    %3 = vector.load %arg3[%c0_3, %c0_4] : memref<8x1xf32, #tpu.memory_space<vmem>>, vector<8x1xf32>
    %c0_5 = arith.constant 0 : index
    %c0_6 = arith.constant 0 : index
    %4 = vector.load %arg4[%c0_5, %c0_6] : memref<1x8xf32, #tpu.memory_space<vmem>>, vector<1x8xf32>
    %5 = vector.broadcast %3 : vector<8x1xf32> to vector<8x8xf32>
    %6 = vector.broadcast %4 : vector<1x8xf32> to vector<8x8xf32>
    %7 = arith.addf %5, %6 : vector<8x8xf32>
    %cst_7 = arith.constant 2.000000e+00 : f32
    %8 = vector.broadcast %cst_7 : f32 to vector<8x8xf32>
    %9 = arith.mulf %8, %2 : vector<8x8xf32>
    %10 = arith.subf %7, %9 : vector<8x8xf32>
    %cst_8 = arith.constant 9.99999996E-13 : f32
    %11 = vector.broadcast %cst_8 : f32 to vector<8x8xf32>
    %12 = arith.maximumf %10, %11 : vector<8x8xf32>
    %13 = math.sqrt %12 : vector<8x8xf32>
    %c0_9 = arith.constant 0 : index
    %c0_10 = arith.constant 0 : index
    %14 = vector.load %arg5[%c0_9, %c0_10] : memref<8x1xf32, #tpu.memory_space<vmem>>, vector<8x1xf32>
    %c0_11 = arith.constant 0 : index
    %c0_12 = arith.constant 0 : index
    %15 = vector.load %arg6[%c0_11, %c0_12] : memref<1x8xf32, #tpu.memory_space<vmem>>, vector<1x8xf32>
    %16 = vector.broadcast %14 : vector<8x1xf32> to vector<8x8xf32>
    %17 = vector.broadcast %15 : vector<1x8xf32> to vector<8x8xf32>
    %18 = arith.cmpf oeq, %16, %17 : vector<8x8xf32>
    %19 = arith.extui %18 : vector<8x8xi1> to vector<8x8xi32>
    %20 = arith.sitofp %19 : vector<8x8xi32> to vector<8x8xf32>
    %cst_13 = arith.constant 1.000000e+00 : f32
    %21 = vector.broadcast %cst_13 : f32 to vector<8x8xf32>
    %22 = arith.subf %21, %20 : vector<8x8xf32>
    %23 = arith.mulf %13, %20 : vector<8x8xf32>
    %cst_14 = arith.constant dense<0xFF800000> : vector<8xf32>
    %24 = vector.multi_reduction <maximumf>, %23, %cst_14 [1] : vector<8x8xf32> to vector<8xf32>
    %25 = vector.shape_cast %24 : vector<8xf32> to vector<8x1xf32>
    %26 = vector.broadcast %25 : vector<8x1xf32> to vector<8x8xf32>
    %27 = arith.subf %23, %26 : vector<8x8xf32>
    %28 = math.exp %27 : vector<8x8xf32>
    %29 = arith.mulf %28, %20 : vector<8x8xf32>
    %cst_15 = arith.constant dense<0.000000e+00> : vector<8xf32>
    %30 = vector.multi_reduction <add>, %29, %cst_15 [1] : vector<8x8xf32> to vector<8xf32>
    %31 = vector.shape_cast %30 : vector<8xf32> to vector<8x1xf32>
    %cst_16 = arith.constant 9.99999997E-7 : f32
    %32 = vector.broadcast %cst_16 : f32 to vector<8x1xf32>
    %33 = arith.addf %31, %32 : vector<8x1xf32>
    %34 = arith.mulf %23, %29 : vector<8x8xf32>
    %cst_17 = arith.constant dense<0.000000e+00> : vector<8xf32>
    %35 = vector.multi_reduction <add>, %34, %cst_17 [1] : vector<8x8xf32> to vector<8xf32>
    %36 = vector.shape_cast %35 : vector<8xf32> to vector<8x1xf32>
    %37 = arith.divf %36, %33 : vector<8x1xf32>
    %c0_18 = arith.constant 0 : index
    %c0_19 = arith.constant 0 : index
    %38 = vector.load %arg7[%c0_18, %c0_19] : memref<8x1xf32, #tpu.memory_space<vmem>>, vector<8x1xf32>
    tpu.vector_store %arg7[%c0_18, %c0_19], %37 {strides = array<i32>} : memref<8x1xf32, #tpu.memory_space<vmem>>, vector<8x1xf32>,
    %cst_20 = arith.constant 0.000000e+00 : f32
    %39 = vector.broadcast %cst_20 : f32 to vector<8x8xf32>
    %40 = arith.subf %39, %13 : vector<8x8xf32>
    %41 = math.exp %40 : vector<8x8xf32>
    %42 = arith.mulf %41, %22 : vector<8x8xf32>
    %cst_21 = arith.constant dense<0.000000e+00> : vector<8xf32>
    %43 = vector.multi_reduction <add>, %42, %cst_21 [1] : vector<8x8xf32> to vector<8xf32>
    %44 = vector.shape_cast %43 : vector<8xf32> to vector<8x1xf32>
    %cst_22 = arith.constant 9.99999997E-7 : f32
    %45 = vector.broadcast %cst_22 : f32 to vector<8x1xf32>
    %46 = arith.addf %44, %45 : vector<8x1xf32>
    %47 = arith.mulf %13, %42 : vector<8x8xf32>
    %cst_23 = arith.constant dense<0.000000e+00> : vector<8xf32>
    %48 = vector.multi_reduction <add>, %47, %cst_23 [1] : vector<8x8xf32> to vector<8xf32>
    %49 = vector.shape_cast %48 : vector<8xf32> to vector<8x1xf32>
    %50 = arith.divf %49, %46 : vector<8x1xf32>
    %c0_24 = arith.constant 0 : index
    %c0_25 = arith.constant 0 : index
    %51 = vector.load %arg8[%c0_24, %c0_25] : memref<8x1xf32, #tpu.memory_space<vmem>>, vector<8x1xf32>
    tpu.vector_store %arg8[%c0_24, %c0_25], %50 {strides = array<i32>} : memref<8x1xf32, #tpu.memory_space<vmem>>, vector<8x1xf32>,
    return
  }
  func.func @transform_0(%arg0: i32) -> (i32, i32) {
    %c0_i32 = arith.constant 0 : i32
    %c0_i32_0 = arith.constant 0 : i32
    return %arg0, %c0_i32 : i32, i32
  }
  func.func @transform_1(%arg0: i32) -> (i32, i32) {
    %c0_i32 = arith.constant 0 : i32
    %c0_i32_0 = arith.constant 0 : i32
    %c0_i32_1 = arith.constant 0 : i32
    return %c0_i32, %c0_i32_0 : i32, i32
  }
  func.func @transform_2(%arg0: i32) -> (i32, i32) {
    %c0_i32 = arith.constant 0 : i32
    %c0_i32_0 = arith.constant 0 : i32
    return %arg0, %c0_i32 : i32, i32
  }
  func.func @transform_3(%arg0: i32) -> (i32, i32) {
    %c0_i32 = arith.constant 0 : i32
    %c0_i32_0 = arith.constant 0 : i32
    %c0_i32_1 = arith.constant 0 : i32
    return %c0_i32, %c0_i32_0 : i32, i32
  }
  func.func @transform_4(%arg0: i32) -> (i32, i32) {
    %c0_i32 = arith.constant 0 : i32
    %c0_i32_0 = arith.constant 0 : i32
    return %arg0, %c0_i32 : i32, i32
  }
  func.func @transform_5(%arg0: i32) -> (i32, i32) {
    %c0_i32 = arith.constant 0 : i32
    %c0_i32_0 = arith.constant 0 : i32
    %c0_i32_1 = arith.constant 0 : i32
    return %c0_i32, %c0_i32_0 : i32, i32
  }
  func.func @transform_6(%arg0: i32) -> (i32, i32) {
    %c0_i32 = arith.constant 0 : i32
    %c0_i32_0 = arith.constant 0 : i32
    return %arg0, %c0_i32 : i32, i32
  }
  func.func @transform_7(%arg0: i32) -> (i32, i32) {
    %c0_i32 = arith.constant 0 : i32
    %c0_i32_0 = arith.constant 0 : i32
    return %arg0, %c0_i32 : i32, i32
  }
}

</mosaic_0001>

<llo_original>
// kernel: tpu_custom_call.1
$region0: #{tpu_custom_call.1}
  #allocation0 [shape = 'u32[]', space=smem, size = 0x4, offset = 0x4, fixed_abs, tag = 'smem constant byte address 0x4 - core index']
  #allocation1 [shape = 'u32[144,128]{1,0:T(1,128)}', space=vmem, size = 0x12000, scoped, tag = 'internal scratch']
  %s0 = inlined_call_operand.vmem [shape: f32[8,32], index: 0, kind: input, shape index: {}]
  %s1 = inlined_call_operand.vmem [shape: f32[32,8], index: 1, kind: input, shape index: {}]
  %s2 = inlined_call_operand.vmem [shape: f32[8,1], index: 2, kind: input, shape index: {}]
  %s3 = inlined_call_operand.vmem [shape: f32[1,8], index: 3, kind: input, shape index: {}]
  %s4 = inlined_call_operand.vmem [shape: f32[8,1], index: 4, kind: input, shape index: {}]
  %s5 = inlined_call_operand.vmem [shape: f32[1,8], index: 5, kind: input, shape index: {}]
  %s6 = inlined_call_operand.vmem [shape: f32[8,1], index: 6, kind: output, shape index: {0}]
  %s7 = inlined_call_operand.vmem [shape: f32[8,1], index: 7, kind: output, shape index: {1}]
  %8 = xla_tuple %s6, %s7
  %s9 = sld [smem:[#allocation0]]
  $region42: #{tpu_custom_call.1} parent=0
    _
  %s11 = ssub.s32 1, %s9
  %s12 = scalar_select 0, %s11, %s9
  // Predicated region
  $region2: #{tpu_custom_call.1} parent=0 // pred_check
    _
  $region3: #{tpu_custom_call.1} parent=0 // pred_check_branch
    %14 = sbr.rel (0) target = $region5
  $region4: #{tpu_custom_call.1} parent=0 // pred_region
    _
  $region5: #{tpu_custom_call.1} parent=0 // pred_fallthru
    _
  // Predicated region
  $region6: #{tpu_custom_call.1} parent=0 // pred_check
    _
  $region7: #{tpu_custom_call.1} parent=0 // pred_check_branch
    %16 = sbr.rel (0) target = $region9
  $region8: #{tpu_custom_call.1} parent=0 // pred_region
    _
  $region9: #{tpu_custom_call.1} parent=0 // pred_fallthru
    _
  // Predicated region
  $region10: #{tpu_custom_call.1} parent=0 // pred_check
    _
  $region11: #{tpu_custom_call.1} parent=0 // pred_check_branch
    %18 = sbr.rel (0) target = $region13
  $region12: #{tpu_custom_call.1} parent=0 // pred_region
    _
  $region13: #{tpu_custom_call.1} parent=0 // pred_fallthru
    _
  // Predicated region
  $region14: #{tpu_custom_call.1} parent=0 // pred_check
    _
  $region15: #{tpu_custom_call.1} parent=0 // pred_check_branch
    %20 = sbr.rel (0) target = $region17
  $region16: #{tpu_custom_call.1} parent=0 // pred_region
    _
  $region17: #{tpu_custom_call.1} parent=0 // pred_fallthru
    _
  // Predicated region
  $region18: #{tpu_custom_call.1} parent=0 // pred_check
    _
  $region19: #{tpu_custom_call.1} parent=0 // pred_check_branch
    %22 = sbr.rel (0) target = $region21
  $region20: #{tpu_custom_call.1} parent=0 // pred_region
    _
  $region21: #{tpu_custom_call.1} parent=0 // pred_fallthru
    _
  // Predicated region
  $region22: #{tpu_custom_call.1} parent=0 // pred_check
    _
  $region23: #{tpu_custom_call.1} parent=0 // pred_check_branch
    %24 = sbr.rel (0) target = $region25
  $region24: #{tpu_custom_call.1} parent=0 // pred_region
    _
  $region25: #{tpu_custom_call.1} parent=0 // pred_fallthru
    _
  %v25 = vld [vmem:[%s0] sm:$0xff]
  %v26 = vld [vmem:[%s1] sm:$0xff]
  %v27 = vld [vmem:[%s1 + $0x8] sm:$0xff]
  %v28 = vld [vmem:[%s1 + $0x10] sm:$0xff]
  %v29 = vld [vmem:[%s1 + $0x18] sm:$0xff]
  %vm30 = vcmask 261120
  %v32 = vsel %vm30, %v25, 0
  %34 = vmatprep.subr.mxu0 0.0
  %35 = vmatpush1.msra.mxu0 0.0
  %36 = vmatprep.subr.mxu0 0.0
  %37 = vmatpush1.msra.mxu0 0.0
  %38 = vmatprep.subr.mxu0 0.0
  %39 = vmatpush1.msra.mxu0 0.0
  %40 = vmatprep.subr.mxu0 0.0
  %41 = vmatpush1.msra.mxu0 0.0
  %42 = vmatprep.subr.mxu0 0.0
  %43 = vmatpush1.msra.mxu0 0.0
  %44 = vmatprep.subr.mxu0 0.0
  %45 = vmatpush1.msra.mxu0 0.0
  %46 = vmatprep.subr.mxu0 0.0
  %47 = vmatpush1.msra.mxu0 0.0
  %48 = vmatprep.subr.mxu0 0.0
  %49 = vmatpush1.msra.mxu0 0.0
  %50 = vmatprep.subr.mxu0 0.0
  %51 = vmatpush1.msra.mxu0 0.0
  %52 = vmatprep.subr.mxu0 0.0
  %53 = vmatpush1.msra.mxu0 0.0
  %54 = vmatprep.subr.mxu0 0.0
  %55 = vmatpush1.msra.mxu0 0.0
  %56 = vmatprep.subr.mxu0 0.0
  %57 = vmatpush1.msra.mxu0 0.0
  %58 = vmatprep.subr.mxu0 0.0
  %59 = vmatpush1.msra.mxu0 %v29
  %60 = vmatprep.subr.mxu0 0.0
  %61 = vmatpush1.msra.mxu0 %v28
  %62 = vmatprep.subr.mxu0 0.0
  %63 = vmatpush1.msra.mxu0 %v27
  %64 = vmatprep.subr.mxu0 0.0
  %65 = vmatpush1.msra.mxu0 %v26
  %66 = vmatprep.subr.mxu0 0.0
  %67 = vmatpush2.msra.mxu0 0.0
  %68 = vmatprep.subr.mxu0 0.0
  %69 = vmatpush2.msra.mxu0 0.0
  %70 = vmatprep.subr.mxu0 0.0
  %71 = vmatpush2.msra.mxu0 0.0
  %72 = vmatprep.subr.mxu0 0.0
  %73 = vmatpush2.msra.mxu0 0.0
  %74 = vmatprep.subr.mxu0 0.0
  %75 = vmatpush2.msra.mxu0 0.0
  %76 = vmatprep.subr.mxu0 0.0
  %77 = vmatpush2.msra.mxu0 0.0
  %78 = vmatprep.subr.mxu0 0.0
  %79 = vmatpush2.msra.mxu0 0.0
  %80 = vmatprep.subr.mxu0 0.0
  %81 = vmatpush2.msra.mxu0 0.0
  %82 = vmatprep.subr.mxu0 0.0
  %83 = vmatpush2.msra.mxu0 0.0
  %84 = vmatprep.subr.mxu0 0.0
  %85 = vmatpush2.msra.mxu0 0.0
  %86 = vmatprep.subr.mxu0 0.0
  %87 = vmatpush2.msra.mxu0 0.0
  %88 = vmatprep.subr.mxu0 0.0
  %89 = vmatpush2.msra.mxu0 0.0
  %90 = vmatprep.subr.mxu0 0.0
  %91 = vmatpush2.msra.mxu0 0.0
  %92 = vmatprep.subr.mxu0 0.0
  %93 = vmatpush2.msra.mxu0 0.0
  %94 = vmatprep.subr.mxu0 0.0
  %95 = vmatpush2.msra.mxu0 0.0
  %96 = vmatprep.subr.mxu0 0.0
  %97 = vmatpush2.msra.mxu0 0.0
  %98 = vmatprep.mubr.f32.mxu0 0.0
  %99 = vmatmul.mubr.f32.gmra.mxu0 %v32
  %v100 = vpop.f32.mrf.mxu0
  %v101 = vadd.f32 0.0, %v100
  %v102 = vpop.f32.mrf.mxu0
  %103 = vdwg.mxu0
  %v104 = vld [vmem:[%s2] sm:$0xff]
  %v105 = vld [vmem:[%s3] sm:$0x1]
  %107 = vset.pattern.permute.xlu0 0
  %108 = vperm.xlu0 %107, %v104
  %v109 = vpop.permute.xlu0 %108
  %v112 = vlaneseq
  %v113 = vshrl.u32 %v112, 7
  %v114 = vsub.s32 0, %v113
  %v115 = vrot.slane %v105, %v114
  %v117 = vadd.f32 %v109, %v115
  %v118 = vmul.f32 %v101, 2.0
  %v119 = vsub.f32 %v117, %v118
  %v120 = vmax.f32 %v119, 1e-12
  %v121 = vrsqrt.pop %v120
  %v122 = vmul.f32 %v120, %v121
  %vm123 = vcmp.eq.f32.partialorder %v120, inf
  %v124 = vsel %vm123, %v120, %v122
  %vm125 = vcmp.eq.f32.partialorder %v120, 0.0
  %v126 = vand.u32 %v120, 2147483648
  %v127 = vsel %vm125, %v126, %v124
  %v128 = vld [vmem:[%s4] sm:$0xff]
  %v129 = vld [vmem:[%s5] sm:$0x1]
  %131 = vset.pattern.permute.xlu0 0
  %132 = vperm.xlu0 %131, %v128
  %v133 = vpop.permute.xlu0 %132
  %v136 = vlaneseq
  %v137 = vshrl.u32 %v136, 7
  %v138 = vsub.s32 0, %v137
  %v139 = vrot.slane %v129, %v138
  %vm141 = vcmp.eq.f32.partialorder %v133, %v139
  %v142 = vsel %vm141, 1, 0
  %v143 = vcvt.s32.f32 %v142
  %v144 = vsub.f32 1.0, %v143
  %v145 = vmul.f32 %v127, %v143
  %vm146 = vcmask 64512
  %v147 = vsel %vm146, %v145, -inf
  %148 = vmax.xlane.f32.xlu0 %v147
  %v149 = vpop.xlane.xlu0 %148
  %v150 = vsub.f32 %v145, %v149
  %v151 = vmul.f32 %v150, 1.442695
  %v152 = vpow.pop %v151
  %v153 = vmul.f32 %v152, %v143
  %v154 = vsel %vm146, %v153, 0.0
  %155 = vadd.xlane.f32.xlu0 %v154
  %v156 = vpop.xlane.xlu0 %155
  %v157 = vadd.f32 %v156, 1e-06
  %v158 = vmul.f32 %v145, %v153
  %v159 = vsel %vm146, %v158, 0.0
  %160 = vadd.xlane.f32.xlu0 %v159
  %v161 = vpop.xlane.xlu0 %160
  %v162 = vrcp.pop %v157
  %v163 = vmul.f32 %v161, %v162
  %vm164 = vcmask 7168
  %165 = vst.msk [vmem:[%s6] sm:$0xff] %vm164, %v163
  %v166 = vsub.f32 0.0, %v127
  %v167 = vmul.f32 %v166, 1.442695
  %v168 = vpow.pop %v167
  %v169 = vmul.f32 %v168, %v144
  %v170 = vsel %vm146, %v169, 0.0
  %171 = vadd.xlane.f32.xlu0 %v170
  %v172 = vpop.xlane.xlu0 %171
  %v173 = vadd.f32 %v172, 1e-06
  %v174 = vmul.f32 %v127, %v169
  %v175 = vsel %vm146, %v174, 0.0
  %176 = vadd.xlane.f32.xlu0 %v175
  %v177 = vpop.xlane.xlu0 %176
  %v178 = vrcp.pop %v173
  %v179 = vmul.f32 %v177, %v178
  %180 = vst.msk [vmem:[%s7] sm:$0xff] %vm164, %v179
  // Predicated region
  $region26: #{tpu_custom_call.1} parent=0 // pred_check
    _
  $region27: #{tpu_custom_call.1} parent=0 // pred_check_branch
    %182 = sbr.rel (0) target = $region29
  $region28: #{tpu_custom_call.1} parent=0 // pred_region
    _
  $region29: #{tpu_custom_call.1} parent=0 // pred_fallthru
    _
  // Predicated region
  $region30: #{tpu_custom_call.1} parent=0 // pred_check
    _
  $region31: #{tpu_custom_call.1} parent=0 // pred_check_branch
    %184 = sbr.rel (0) target = $region33
  $region32: #{tpu_custom_call.1} parent=0 // pred_region
    _
  $region33: #{tpu_custom_call.1} parent=0 // pred_fallthru
    _
  // Predicated region
  $region34: #{tpu_custom_call.1} parent=0 // pred_check
    _
  $region35: #{tpu_custom_call.1} parent=0 // pred_check_branch
    %186 = sbr.rel (0) target = $region37
  $region36: #{tpu_custom_call.1} parent=0 // pred_region
    _
  $region37: #{tpu_custom_call.1} parent=0 // pred_fallthru
    _
  // Predicated region
  $region38: #{tpu_custom_call.1} parent=0 // pred_check
    _
  $region39: #{tpu_custom_call.1} parent=0 // pred_check_branch
    %188 = sbr.rel (0) target = $region41
  $region40: #{tpu_custom_call.1} parent=0 // pred_region
    _
  $region41: #{tpu_custom_call.1} parent=0 // pred_fallthru
    _

// kernel: tpu_custom_call.1
$region0: #{tpu_custom_call.1}
  #allocation0 [shape = 'u32[]', space=smem, size = 0x4, offset = 0x4, fixed_abs, tag = 'smem constant byte address 0x4 - core index']
  #allocation1 [shape = 'u32[144,128]{1,0:T(1,128)}', space=vmem, size = 0x12000, scoped, tag = 'internal scratch']
  %s0 = inlined_call_operand.vmem [shape: f32[8,32], index: 0, kind: input, shape index: {}]
  %s1 = inlined_call_operand.vmem [shape: f32[32,8], index: 1, kind: input, shape index: {}]
  %s2 = inlined_call_operand.vmem [shape: f32[8,1], index: 2, kind: input, shape index: {}]
  %s3 = inlined_call_operand.vmem [shape: f32[1,8], index: 3, kind: input, shape index: {}]
  %s4 = inlined_call_operand.vmem [shape: f32[8,1], index: 4, kind: input, shape index: {}]
  %s5 = inlined_call_operand.vmem [shape: f32[1,8], index: 5, kind: input, shape index: {}]
  %s6 = inlined_call_operand.vmem [shape: f32[8,1], index: 6, kind: output, shape index: {0}]
  %s7 = inlined_call_operand.vmem [shape: f32[8,1], index: 7, kind: output, shape index: {1}]
  %8 = xla_tuple %s6, %s7
  %s9 = sld [smem:[#allocation0]]
  $region42: #{tpu_custom_call.1} parent=0
    _
  %s11 = ssub.s32 1, %s9
  %s12 = scalar_select 0, %s11, %s9
  // Predicated region
  $region2: #{tpu_custom_call.1} parent=0 // pred_check
    _
  $region3: #{tpu_custom_call.1} parent=0 // pred_check_branch
    %14 = sbr.rel (0) target = $region5
  $region4: #{tpu_custom_call.1} parent=0 // pred_region
    _
  $region5: #{tpu_custom_call.1} parent=0 // pred_fallthru
    _
  // Predicated region
  $region6: #{tpu_custom_call.1} parent=0 // pred_check
    _
  $region7: #{tpu_custom_call.1} parent=0 // pred_check_branch
    %16 = sbr.rel (0) target = $region9
  $region8: #{tpu_custom_call.1} parent=0 // pred_region
    _
  $region9: #{tpu_custom_call.1} parent=0 // pred_fallthru
    _
  // Predicated region
  $region10: #{tpu_custom_call.1} parent=0 // pred_check
    _
  $region11: #{tpu_custom_call.1} parent=0 // pred_check_branch
    %18 = sbr.rel (0) target = $region13
  $region12: #{tpu_custom_call.1} parent=0 // pred_region
    _
  $region13: #{tpu_custom_call.1} parent=0 // pred_fallthru
    _
  // Predicated region
  $region14: #{tpu_custom_call.1} parent=0 // pred_check
    _
  $region15: #{tpu_custom_call.1} parent=0 // pred_check_branch
    %20 = sbr.rel (0) target = $region17
  $region16: #{tpu_custom_call.1} parent=0 // pred_region
    _
  $region17: #{tpu_custom_call.1} parent=0 // pred_fallthru
    _
  // Predicated region
  $region18: #{tpu_custom_call.1} parent=0 // pred_check
    _
  $region19: #{tpu_custom_call.1} parent=0 // pred_check_branch
    %22 = sbr.rel (0) target = $region21
  $region20: #{tpu_custom_call.1} parent=0 // pred_region
    _
  $region21: #{tpu_custom_call.1} parent=0 // pred_fallthru
    _
  // Predicated region
  $region22: #{tpu_custom_call.1} parent=0 // pred_check
    _
  $region23: #{tpu_custom_call.1} parent=0 // pred_check_branch
    %24 = sbr.rel (0) target = $region25
  $region24: #{tpu_custom_call.1} parent=0 // pred_region
    _
  $region25: #{tpu_custom_call.1} parent=0 // pred_fallthru
    _
  %v25 = vld [vmem:[%s0] sm:$0xff]
  %v26 = vld [vmem:[%s1] sm:$0xff]
  %v27 = vld [vmem:[%s1 + $0x8] sm:$0xff]
  %v28 = vld [vmem:[%s1 + $0x10] sm:$0xff]
  %v29 = vld [vmem:[%s1 + $0x18] sm:$0xff]
  %vm30 = vcmask 261120
  %v32 = vsel %vm30, %v25, 0
  %34 = vmatprep.subr.mxu0 0.0
  %35 = vmatpush1.msra.mxu0 0.0
  %36 = vmatprep.subr.mxu0 0.0
  %37 = vmatpush1.msra.mxu0 0.0
  %38 = vmatprep.subr.mxu0 0.0
  %39 = vmatpush1.msra.mxu0 0.0
  %40 = vmatprep.subr.mxu0 0.0
  %41 = vmatpush1.msra.mxu0 0.0
  %42 = vmatprep.subr.mxu0 0.0
  %43 = vmatpush1.msra.mxu0 0.0
  %44 = vmatprep.subr.mxu0 0.0
  %45 = vmatpush1.msra.mxu0 0.0
  %46 = vmatprep.subr.mxu0 0.0
  %47 = vmatpush1.msra.mxu0 0.0
  %48 = vmatprep.subr.mxu0 0.0
  %49 = vmatpush1.msra.mxu0 0.0
  %50 = vmatprep.subr.mxu0 0.0
  %51 = vmatpush1.msra.mxu0 0.0
  %52 = vmatprep.subr.mxu0 0.0
  %53 = vmatpush1.msra.mxu0 0.0
  %54 = vmatprep.subr.mxu0 0.0
  %55 = vmatpush1.msra.mxu0 0.0
  %56 = vmatprep.subr.mxu0 0.0
  %57 = vmatpush1.msra.mxu0 0.0
  %58 = vmatprep.subr.mxu0 0.0
  %59 = vmatpush1.msra.mxu0 %v29
  %60 = vmatprep.subr.mxu0 0.0
  %61 = vmatpush1.msra.mxu0 %v28
  %62 = vmatprep.subr.mxu0 0.0
  %63 = vmatpush1.msra.mxu0 %v27
  %64 = vmatprep.subr.mxu0 0.0
  %65 = vmatpush1.msra.mxu0 %v26
  %66 = vmatprep.subr.mxu0 0.0
  %67 = vmatpush2.msra.mxu0 0.0
  %68 = vmatprep.subr.mxu0 0.0
  %69 = vmatpush2.msra.mxu0 0.0
  %70 = vmatprep.subr.mxu0 0.0
  %71 = vmatpush2.msra.mxu0 0.0
  %72 = vmatprep.subr.mxu0 0.0
  %73 = vmatpush2.msra.mxu0 0.0
  %74 = vmatprep.subr.mxu0 0.0
  %75 = vmatpush2.msra.mxu0 0.0
  %76 = vmatprep.subr.mxu0 0.0
  %77 = vmatpush2.msra.mxu0 0.0
  %78 = vmatprep.subr.mxu0 0.0
  %79 = vmatpush2.msra.mxu0 0.0
  %80 = vmatprep.subr.mxu0 0.0
  %81 = vmatpush2.msra.mxu0 0.0
  %82 = vmatprep.subr.mxu0 0.0
  %83 = vmatpush2.msra.mxu0 0.0
  %84 = vmatprep.subr.mxu0 0.0
  %85 = vmatpush2.msra.mxu0 0.0
  %86 = vmatprep.subr.mxu0 0.0
  %87 = vmatpush2.msra.mxu0 0.0
  %88 = vmatprep.subr.mxu0 0.0
  %89 = vmatpush2.msra.mxu0 0.0
  %90 = vmatprep.subr.mxu0 0.0
  %91 = vmatpush2.msra.mxu0 0.0
  %92 = vmatprep.subr.mxu0 0.0
  %93 = vmatpush2.msra.mxu0 0.0
  %94 = vmatprep.subr.mxu0 0.0
  %95 = vmatpush2.msra.mxu0 0.0
  %96 = vmatprep.subr.mxu0 0.0
  %97 = vmatpush2.msra.mxu0 0.0
  %98 = vmatprep.mubr.f32.mxu0 0.0
  %99 = vmatmul.mubr.f32.gmra.mxu0 %v32
  %v100 = vpop.f32.mrf.mxu0
  %v101 = vadd.f32 0.0, %v100
  %v102 = vpop.f32.mrf.mxu0
  %103 = vdwg.mxu0
  %v104 = vld [vmem:[%s2] sm:$0xff]
  %v105 = vld [vmem:[%s3] sm:$0x1]
  %107 = vset.pattern.permute.xlu0 0
  %108 = vperm.xlu0 %107, %v104
  %v109 = vpop.permute.xlu0 %108
  %v112 = vlaneseq
  %v113 = vshrl.u32 %v112, 7
  %v114 = vsub.s32 0, %v113
  %v115 = vrot.slane %v105, %v114
  %v117 = vadd.f32 %v109, %v115
  %v118 = vmul.f32 %v101, 2.0
  %v119 = vsub.f32 %v117, %v118
  %v120 = vmax.f32 %v119, 1e-12
  %v121 = vrsqrt.pop %v120
  %v122 = vmul.f32 %v120, %v121
  %vm123 = vcmp.eq.f32.partialorder %v120, inf
  %v124 = vsel %vm123, %v120, %v122
  %vm125 = vcmp.eq.f32.partialorder %v120, 0.0
  %v126 = vand.u32 %v120, 2147483648
  %v127 = vsel %vm125, %v126, %v124
  %v128 = vld [vmem:[%s4] sm:$0xff]
  %v129 = vld [vmem:[%s5] sm:$0x1]
  %131 = vset.pattern.permute.xlu0 0
  %132 = vperm.xlu0 %131, %v128
  %v133 = vpop.permute.xlu0 %132
  %v136 = vlaneseq
  %v137 = vshrl.u32 %v136, 7
  %v138 = vsub.s32 0, %v137
  %v139 = vrot.slane %v129, %v138
  %vm141 = vcmp.eq.f32.partialorder %v133, %v139
  %v142 = vsel %vm141, 1, 0
  %v143 = vcvt.s32.f32 %v142
  %v144 = vsub.f32 1.0, %v143
  %v145 = vmul.f32 %v127, %v143
  %vm146 = vcmask 64512
  %v147 = vsel %vm146, %v145, -inf
  %148 = vmax.xlane.f32.xlu0 %v147
  %v149 = vpop.xlane.xlu0 %148
  %v150 = vsub.f32 %v145, %v149
  %v151 = vmul.f32 %v150, 1.442695
  %v152 = vpow.pop %v151
  %v153 = vmul.f32 %v152, %v143
  %v154 = vsel %vm146, %v153, 0.0
  %155 = vadd.xlane.f32.xlu0 %v154
  %v156 = vpop.xlane.xlu0 %155
  %v157 = vadd.f32 %v156, 1e-06
  %v158 = vmul.f32 %v145, %v153
  %v159 = vsel %vm146, %v158, 0.0
  %160 = vadd.xlane.f32.xlu0 %v159
  %v161 = vpop.xlane.xlu0 %160
  %v162 = vrcp.pop %v157
  %v163 = vmul.f32 %v161, %v162
  %vm164 = vcmask 7168
  %165 = vst.msk [vmem:[%s6] sm:$0xff] %vm164, %v163
  %v166 = vsub.f32 0.0, %v127
  %v167 = vmul.f32 %v166, 1.442695
  %v168 = vpow.pop %v167
  %v169 = vmul.f32 %v168, %v144
  %v170 = vsel %vm146, %v169, 0.0
  %171 = vadd.xlane.f32.xlu0 %v170
  %v172 = vpop.xlane.xlu0 %171
  %v173 = vadd.f32 %v172, 1e-06
  %v174 = vmul.f32 %v127, %v169
  %v175 = vsel %vm146, %v174, 0.0
  %176 = vadd.xlane.f32.xlu0 %v175
  %v177 = vpop.xlane.xlu0 %176
  %v178 = vrcp.pop %v173
  %v179 = vmul.f32 %v177, %v178
  %180 = vst.msk [vmem:[%s7] sm:$0xff] %vm164, %v179
  // Predicated region
  $region26: #{tpu_custom_call.1} parent=0 // pred_check
    _
  $region27: #{tpu_custom_call.1} parent=0 // pred_check_branch
    %182 = sbr.rel (0) target = $region29
  $region28: #{tpu_custom_call.1} parent=0 // pred_region
    _
  $region29: #{tpu_custom_call.1} parent=0 // pred_fallthru
    _
  // Predicated region
  $region30: #{tpu_custom_call.1} parent=0 // pred_check
    _
  $region31: #{tpu_custom_call.1} parent=0 // pred_check_branch
    %184 = sbr.rel (0) target = $region33
  $region32: #{tpu_custom_call.1} parent=0 // pred_region
    _
  $region33: #{tpu_custom_call.1} parent=0 // pred_fallthru
    _
  // Predicated region
  $region34: #{tpu_custom_call.1} parent=0 // pred_check
    _
  $region35: #{tpu_custom_call.1} parent=0 // pred_check_branch
    %186 = sbr.rel (0) target = $region37
  $region36: #{tpu_custom_call.1} parent=0 // pred_region
    _
  $region37: #{tpu_custom_call.1} parent=0 // pred_fallthru
    _
  // Predicated region
  $region38: #{tpu_custom_call.1} parent=0 // pred_check
    _
  $region39: #{tpu_custom_call.1} parent=0 // pred_check_branch
    %188 = sbr.rel (0) target = $region41
  $region40: #{tpu_custom_call.1} parent=0 // pred_region
    _
  $region41: #{tpu_custom_call.1} parent=0 // pred_fallthru
    _

</llo_original>
